<compile_context>
chip_gen: v7x
topology: tpu7x:2x2x1
jax: 0.10.0
libtpu: 0.0.40
codegen_flags: <defaults>
</compile_context>

<pallas_src>
import functools

import jax
import jax.numpy as jnp
from jax.experimental import pallas as pl
from jax.experimental.pallas import tpu as pltpu


_VMEM_LIMIT = 32 * 1024 * 1024  # conservative; safe on v5e/v6e/v7x


def _round_up(x, m):
    return ((x + m - 1) // m) * m


def _row_tile(n_rows, block_rows):
    """Batch-tile size: either the full dim (always a legal block) or a
    multiple of 8 sublanes."""
    if n_rows <= block_rows:
        return n_rows
    return _round_up(min(block_rows, n_rows), 8)


# ------------------------------- kernels ----------------------------------- #

def _linear_kernel(x_ref, w_ref, b_ref, o_ref):
    """One batch tile of y = X @ W + b.
    Shapes (unpadded): x (tm, D), w (D, O), b (1, O) -> o (tm, O)."""
    o_ref[...] = (
        jnp.dot(x_ref[...], w_ref[...], preferred_element_type=jnp.float32)
        + b_ref[...].astype(jnp.float32)
    ).astype(o_ref.dtype)


def _mse_sum_kernel(n_rows, tm, yhat_ref, y_ref, o_ref):
    """Accumulate sum((yhat - y)^2) over batch tiles into a resident (1,1)
    output block.  Rows >= n_rows (partial last tile) are masked; the divisor
    (true element count) is applied in the wrapper."""
    i = pl.program_id(0)

    @pl.when(i == 0)
    def _():
        o_ref[...] = jnp.zeros_like(o_ref)

    d = yhat_ref[...].astype(jnp.float32) - y_ref[...].astype(jnp.float32)
    row_ids = jax.lax.broadcasted_iota(jnp.int32, d.shape, 0) + i * tm
    d = jnp.where(row_ids < n_rows, d, 0.0)
    o_ref[...] += jnp.sum(d * d).reshape(1, 1)


def _linear_mse_kernel(n_rows, tm, x_ref, w_ref, b_ref, y_ref,
                       o_ref, sse_ref):
    """Fused forward + MSE epilogue: writes y_hat AND accumulates the squared
    error in the same pass (saves an HBM write + re-read of y_hat)."""
    i = pl.program_id(0)

    @pl.when(i == 0)
    def _():
        sse_ref[...] = jnp.zeros_like(sse_ref)

    yhat = (jnp.dot(x_ref[...], w_ref[...], preferred_element_type=jnp.float32)
            + b_ref[...].astype(jnp.float32))
    o_ref[...] = yhat.astype(o_ref.dtype)

    # Mask rows beyond the true batch (partial last tile) so they do not
    # pollute the loss; jnp.where drops any junk from out-of-bounds reads.
    row_ids = jax.lax.broadcasted_iota(jnp.int32, yhat.shape, 0) + i * tm
    d = jnp.where(row_ids < n_rows,
                  yhat - y_ref[...].astype(jnp.float32), 0.0)
    sse_ref[...] += jnp.sum(d * d).reshape(1, 1)


# ------------------------------- wrappers ----------------------------------- #

def linear_forward(x, w, b, *, block_rows=1024, compute_dtype=None):
    """y = x @ w + b as a batch-tiled, pipelined Pallas kernel (no padding)."""
    N, D = x.shape
    Dw, O = w.shape
    assert D == Dw, "inner dimension mismatch"
    if compute_dtype is not None:
        # NOTE: only a real bandwidth win if the data already lives in bf16;
        # kept as an opt-in for v6e/v7x. Accumulation stays f32 in-kernel.
        x = x.astype(compute_dtype)
        w = w.astype(compute_dtype)
    b2 = b.reshape(1, O).astype(jnp.float32)

    tm = _row_tile(N, block_rows)
    grid = (pl.cdiv(N, tm),)
    out_dtype = x.dtype

    cost = pl.CostEstimate(
        flops=2 * N * D * O,
        transcendentals=0,
        bytes_accessed=(N * D * x.dtype.itemsize
                        + D * O * w.dtype.itemsize
                        + O * 4
                        + N * O * jnp.dtype(out_dtype).itemsize),
    )

    return pl.pallas_call(
        _linear_kernel,
        out_shape=jax.ShapeDtypeStruct((N, O), out_dtype),
        grid=grid,
        in_specs=[
            pl.BlockSpec((tm, D), lambda i: (i, 0)),   # X: streamed
            pl.BlockSpec((D, O), lambda i: (0, 0)),    # W: resident
            pl.BlockSpec((1, O), lambda i: (0, 0)),    # b: resident
        ],
        out_specs=pl.BlockSpec((tm, O), lambda i: (i, 0)),
        compiler_params=pltpu.CompilerParams(
            dimension_semantics=("parallel",),   # independent batch tiles
            vmem_limit_bytes=_VMEM_LIMIT,
        ),
        cost_estimate=cost,
    )(x, w, b2)


def mse_loss(y_hat, y, *, block_rows=2048):
    """Mean-squared-error (nn.MSELoss, reduction='mean') as a tiled
    accumulator kernel streaming the operands directly (no slab copies)."""
    assert y_hat.shape == y.shape
    n = y_hat.size
    if y_hat.ndim == 1:
        yh2, y2 = y_hat.reshape(-1, 1), y.reshape(-1, 1)
    else:
        last = y_hat.shape[-1]
        yh2, y2 = y_hat.reshape(-1, last), y.reshape(-1, last)
    R, C = yh2.shape

    tm = _row_tile(R, block_rows)
    grid = (pl.cdiv(R, tm),)

    cost = pl.CostEstimate(
        flops=3 * n,
        transcendentals=0,
        bytes_accessed=n * (yh2.dtype.itemsize + y2.dtype.itemsize) + 4,
    )

    total = pl.pallas_call(
        functools.partial(_mse_sum_kernel, R, tm),
        out_shape=jax.ShapeDtypeStruct((1, 1), jnp.float32),
        grid=grid,
        in_specs=[
            pl.BlockSpec((tm, C), lambda i: (i, 0)),
            pl.BlockSpec((tm, C), lambda i: (i, 0)),
        ],
        out_specs=pl.BlockSpec((1, 1), lambda i: (0, 0)),
        compiler_params=pltpu.CompilerParams(
            dimension_semantics=("arbitrary",),  # accumulator is resident
            vmem_limit_bytes=_VMEM_LIMIT,
        ),
        cost_estimate=cost,
    )(yh2, y2)
    return total[0, 0] / jnp.float32(n)          # divide by TRUE element count


def linear_forward_and_mse(x, w, b, y, *, block_rows=1024, compute_dtype=None):
    """Fused forward + loss: one pass over X, y_hat never re-read from HBM."""
    N, D = x.shape
    Dw, O = w.shape
    assert D == Dw, "inner dimension mismatch"
    assert y.shape == (N, O), "label shape must match forward output"
    if compute_dtype is not None:
        x = x.astype(compute_dtype)
        w = w.astype(compute_dtype)
    b2 = b.reshape(1, O).astype(jnp.float32)

    tm = _row_tile(N, block_rows)
    grid = (pl.cdiv(N, tm),)
    out_dtype = x.dtype

    cost = pl.CostEstimate(
        flops=2 * N * D * O + 3 * N * O,
        transcendentals=0,
        bytes_accessed=(N * D * x.dtype.itemsize
                        + D * O * w.dtype.itemsize
                        + O * 4
                        + N * O * (y.dtype.itemsize
                                   + jnp.dtype(out_dtype).itemsize)
                        + 4),
    )

    yhat, sse = pl.pallas_call(
        functools.partial(_linear_mse_kernel, N, tm),
        out_shape=(jax.ShapeDtypeStruct((N, O), out_dtype),
                   jax.ShapeDtypeStruct((1, 1), jnp.float32)),
        grid=grid,
        in_specs=[
            pl.BlockSpec((tm, D), lambda i: (i, 0)),   # X: streamed
            pl.BlockSpec((D, O), lambda i: (0, 0)),    # W: resident
            pl.BlockSpec((1, O), lambda i: (0, 0)),    # b: resident
            pl.BlockSpec((tm, O), lambda i: (i, 0)),   # y: streamed
        ],
        out_specs=(pl.BlockSpec((tm, O), lambda i: (i, 0)),
                   pl.BlockSpec((1, 1), lambda i: (0, 0))),
        compiler_params=pltpu.CompilerParams(
            # loss accumulator is resident across the batch axis -> arbitrary
            dimension_semantics=("arbitrary",),
            vmem_limit_bytes=_VMEM_LIMIT,
        ),
        cost_estimate=cost,
    )(x, w, b2, y)
    loss = sse[0, 0] / jnp.float32(N * O)
    return yhat, loss


# ------------------------------- module ------------------------------------- #

class PallasModule:
    """JAX/Pallas analogue of the d2l `Module` base class: forward(X) is
    self.net(X) with net realized as a linear layer (chapter-3 model)."""
    # TODO(synk): ProgressBoard plotting, trainer bookkeeping and
    # configure_optimizers (torch.optim.SGD) are host-side and have no Pallas
    # equivalent; they are omitted.

    def __init__(self, in_features, out_features=1, key=None,
                 compute_dtype=None):
        key = jax.random.PRNGKey(0) if key is None else key
        # W ~ N(0, 0.01), b = 0  (as in the chapter)
        self.w = 0.01 * jax.random.normal(
            key, (in_features, out_features), dtype=jnp.float32)
        self.b = jnp.zeros((out_features,), dtype=jnp.float32)
        # e.g. jnp.bfloat16 on v6e/v7x (relax test tolerances if enabled)
        self.compute_dtype = compute_dtype

    def forward(self, X):
        return linear_forward(X, self.w, self.b,
                              compute_dtype=self.compute_dtype)

    def loss(self, y_hat, y):
        return mse_loss(y_hat, y)

    def training_step(self, batch):
        X, y = batch
        _, l = linear_forward_and_mse(X, self.w, self.b, y,
                                      compute_dtype=self.compute_dtype)
        return l

    def __call__(self, X):
        return self.forward(X)


# --------------------------------- main ------------------------------------- #

if __name__ == "__main__":
    key = jax.random.PRNGKey(0)
    k_x, k_y, k_w = jax.random.split(key, 3)

    batch, in_features, out_features = 8, 32, 1
    X = jax.random.normal(k_x, (batch, in_features), dtype=jnp.float32)
    y = jax.random.normal(k_y, (batch, out_features), dtype=jnp.float32)

    model = PallasModule(in_features, out_features, key=k_w)

    # Forward (unpadded, batch-tiled linear kernel).
    y_hat = jax.block_until_ready(model(X))
    ref = X @ model.w + model.b
    assert jnp.allclose(y_hat, ref, atol=1e-5), "forward mismatch"

    # Standalone tiled MSE kernel.
    l = jax.block_until_ready(model.loss(y_hat, y))
    ref_l = jnp.mean((y_hat - y) ** 2)
    assert jnp.allclose(l, ref_l, atol=1e-5), "loss mismatch"

    # Fused forward + loss (training_step path).
    y_hat_f, l_f = linear_forward_and_mse(X, model.w, model.b, y)
    jax.block_until_ready((y_hat_f, l_f))
    assert jnp.allclose(y_hat_f, ref, atol=1e-5), "fused forward mismatch"
    assert jnp.allclose(l_f, jnp.mean((ref - y) ** 2), atol=1e-5), \
        "fused loss mismatch"

    # Multi-tile + partial-last-tile path (exercises the resident accumulator
    # and the in-kernel row masking): batch not divisible by the tile.
    N2 = 20
    X2 = jax.random.normal(jax.random.PRNGKey(7), (N2, in_features),
                           dtype=jnp.float32)
    y2 = jax.random.normal(jax.random.PRNGKey(8), (N2, out_features),
                           dtype=jnp.float32)
    ref2 = X2 @ model.w + model.b
    yh2 = jax.block_until_ready(
        linear_forward(X2, model.w, model.b, block_rows=8))
    assert jnp.allclose(yh2, ref2, atol=1e-5), "tiled forward mismatch"
    l2 = jax.block_until_ready(mse_loss(yh2, y2, block_rows=8))
    assert jnp.allclose(l2, jnp.mean((ref2 - y2) ** 2), atol=1e-5), \
        "tiled loss mismatch"
    yh2f, l2f = linear_forward_and_mse(X2, model.w, model.b, y2, block_rows=8)
    jax.block_until_ready((yh2f, l2f))
    assert jnp.allclose(yh2f, ref2, atol=1e-5), "tiled fused forward mismatch"
    assert jnp.allclose(l2f, jnp.mean((ref2 - y2) ** 2), atol=1e-5), \
        "tiled fused loss mismatch"

    print("KERNEL_OK")
</pallas_src>

<mosaic_0001>
module attributes {stable_mosaic.version = 11 : i64} {
  func.func @_linear_kernel(%arg0: i32, %arg1: memref<8x32xf32, #tpu.memory_space<vmem>>, %arg2: memref<32x1xf32, #tpu.memory_space<vmem>>, %arg3: memref<1x1xf32, #tpu.memory_space<vmem>>, %arg4: memref<8x1xf32, #tpu.memory_space<vmem>>) attributes {dimension_semantics = [#tpu.dimension_semantics<parallel>], iteration_bounds = array<i64: 1>, scalar_prefetch = 0 : i64, scratch_operands = 0 : i64, tpu.core_type = #tpu.core_type<tc>, window_params = [{transform_indices = @transform_0, window_bounds = array<i64: 8, 32>}, {pipeline_mode = #tpu.pipeline_mode<synchronous>, transform_indices = @transform_1, window_bounds = array<i64: 32, 1>}, {pipeline_mode = #tpu.pipeline_mode<synchronous>, transform_indices = @transform_2, window_bounds = array<i64: 1, 1>}, {transform_indices = @transform_3, window_bounds = array<i64: 8, 1>}]} {
    %c0 = arith.constant 0 : index
    %c0_0 = arith.constant 0 : index
    %0 = vector.load %arg1[%c0, %c0_0] : memref<8x32xf32, #tpu.memory_space<vmem>>, vector<8x32xf32>
    %c0_1 = arith.constant 0 : index
    %c0_2 = arith.constant 0 : index
    %1 = vector.load %arg2[%c0_1, %c0_2] : memref<32x1xf32, #tpu.memory_space<vmem>>, vector<32x1xf32>
    %cst = arith.constant dense<0.000000e+00> : vector<8x1xf32>
    %2 = tpu.matmul %0, %1, %cst {dimension_numbers = #tpu.dot_dimension_numbers<[1], [0], [0], [1], [0, 0, 1, 1], [], []>} : vector<8x32xf32>, vector<32x1xf32>, vector<8x1xf32> -> vector<8x1xf32>
    %c0_3 = arith.constant 0 : index
    %c0_4 = arith.constant 0 : index
    %3 = vector.load %arg3[%c0_3, %c0_4] : memref<1x1xf32, #tpu.memory_space<vmem>>, vector<1x1xf32>
    %4 = vector.broadcast %3 : vector<1x1xf32> to vector<8x1xf32>
    %5 = arith.addf %2, %4 : vector<8x1xf32>
    %c0_5 = arith.constant 0 : index
    %c0_6 = arith.constant 0 : index
    %6 = vector.load %arg4[%c0_5, %c0_6] : memref<8x1xf32, #tpu.memory_space<vmem>>, vector<8x1xf32>
    tpu.vector_store %arg4[%c0_5, %c0_6], %5 {strides = array<i32>} : memref<8x1xf32, #tpu.memory_space<vmem>>, vector<8x1xf32>,
    return
  }
  func.func @transform_0(%arg0: i32) -> (i32, i32) {
    %c0_i32 = arith.constant 0 : i32
    %c0_i32_0 = arith.constant 0 : i32
    return %arg0, %c0_i32 : i32, i32
  }
  func.func @transform_1(%arg0: i32) -> (i32, i32) {
    %c0_i32 = arith.constant 0 : i32
    %c0_i32_0 = arith.constant 0 : i32
    %c0_i32_1 = arith.constant 0 : i32
    return %c0_i32, %c0_i32_0 : i32, i32
  }
  func.func @transform_2(%arg0: i32) -> (i32, i32) {
    %c0_i32 = arith.constant 0 : i32
    %c0_i32_0 = arith.constant 0 : i32
    %c0_i32_1 = arith.constant 0 : i32
    return %c0_i32, %c0_i32_0 : i32, i32
  }
  func.func @transform_3(%arg0: i32) -> (i32, i32) {
    %c0_i32 = arith.constant 0 : i32
    %c0_i32_0 = arith.constant 0 : i32
    return %arg0, %c0_i32 : i32, i32
  }
}

</mosaic_0001>

<llo_original>
// kernel: tpu_custom_call.1
$region0: #{tpu_custom_call.1}
  #allocation0 [shape = 'u32[]', space=smem, size = 0x4, offset = 0x4, fixed_abs, tag = 'smem constant byte address 0x4 - core index']
  #allocation1 [shape = 'u32[144,128]{1,0:T(1,128)}', space=vmem, size = 0x12000, scoped, tag = 'internal scratch']
  #allocation2 [shape = 'f32[1,1]{1,0:T(1,128)S(1)}', space=vmem, size = 0x200, scoped, tag = 'scoped memory for tpu_custom_call.1']
  %s0 = inlined_call_operand.vmem [shape: f32[8,32], index: 0, kind: input, shape index: {}]
  %s1 = inlined_call_operand.vmem [shape: f32[32,1], index: 1, kind: input, shape index: {}]
  %s2 = inlined_call_operand.<no memory space> [shape: f32[1,1], index: 2, kind: input, shape index: {}]
  %s3 = inlined_call_operand.vmem [shape: f32[8,1], index: 3, kind: output, shape index: {}]
  %s4 = sld [smem:[#allocation0]]
  $region22: #{tpu_custom_call.1} parent=0
    _
  %s6 = ssub.s32 1, %s4
  %s7 = scalar_select 0, %s6, %s4
  %v8 = vstv %s2
  %9 = vst [vmem:[#allocation2] sm:$0x1] %v8
  // Predicated region
  $region2: #{tpu_custom_call.1} parent=0 // pred_check
    _
  $region3: #{tpu_custom_call.1} parent=0 // pred_check_branch
    %11 = sbr.rel (0) target = $region5
  $region4: #{tpu_custom_call.1} parent=0 // pred_region
    _
  $region5: #{tpu_custom_call.1} parent=0 // pred_fallthru
    _
  // Predicated region
  $region6: #{tpu_custom_call.1} parent=0 // pred_check
    _
  $region7: #{tpu_custom_call.1} parent=0 // pred_check_branch
    %13 = sbr.rel (0) target = $region9
  $region8: #{tpu_custom_call.1} parent=0 // pred_region
    _
  $region9: #{tpu_custom_call.1} parent=0 // pred_fallthru
    _
  // Predicated region
  $region10: #{tpu_custom_call.1} parent=0 // pred_check
    _
  $region11: #{tpu_custom_call.1} parent=0 // pred_check_branch
    %15 = sbr.rel (0) target = $region13
  $region12: #{tpu_custom_call.1} parent=0 // pred_region
    _
  $region13: #{tpu_custom_call.1} parent=0 // pred_fallthru
    _
  %v16 = vld [vmem:[%s0] sm:$0xff]
  %v17 = vld [vmem:[%s1] sm:$0xff]
  %v18 = vld [vmem:[%s1 + $0x8] sm:$0xff]
  %v19 = vld [vmem:[%s1 + $0x10] sm:$0xff]
  %v20 = vld [vmem:[%s1 + $0x18] sm:$0xff]
  %v21 = vld [vmem:[#allocation2] sm:$0x1]
  %v23 = vlaneseq
  %v24 = vshrl.u32 %v23, 7
  %v25 = vsub.s32 0, %v24
  %v26 = vrot.slane %v21, %v25
  %vm28 = vcmask 261120
  %v30 = vsel %vm28, %v16, 0
  %32 = vmatprep.subr.mxu0 0.0
  %33 = vmatpush1.msra.mxu0 %v17
  %34 = vmatprep.subr.mxu0 0.0
  %35 = vmatpush1.msra.mxu0 %v18
  %36 = vmatprep.subr.mxu0 0.0
  %37 = vmatpush1.msra.mxu0 %v19
  %38 = vmatprep.subr.mxu0 0.0
  %39 = vmatpush1.msra.mxu0 %v20
  %40 = vmatprep.subr.mxu0 0.0
  %41 = vmatpush1.msra.mxu0 0.0
  %42 = vmatprep.subr.mxu0 0.0
  %43 = vmatpush1.msra.mxu0 0.0
  %44 = vmatprep.subr.mxu0 0.0
  %45 = vmatpush1.msra.mxu0 0.0
  %46 = vmatprep.subr.mxu0 0.0
  %47 = vmatpush1.msra.mxu0 0.0
  %48 = vmatprep.subr.mxu0 0.0
  %49 = vmatpush1.msra.mxu0 0.0
  %50 = vmatprep.subr.mxu0 0.0
  %51 = vmatpush1.msra.mxu0 0.0
  %52 = vmatprep.subr.mxu0 0.0
  %53 = vmatpush1.msra.mxu0 0.0
  %54 = vmatprep.subr.mxu0 0.0
  %55 = vmatpush1.msra.mxu0 0.0
  %56 = vmatprep.subr.mxu0 0.0
  %57 = vmatpush1.msra.mxu0 0.0
  %58 = vmatprep.subr.mxu0 0.0
  %59 = vmatpush1.msra.mxu0 0.0
  %60 = vmatprep.subr.mxu0 0.0
  %61 = vmatpush1.msra.mxu0 0.0
  %62 = vmatprep.subr.mxu0 0.0
  %63 = vmatpush1.msra.mxu0 0.0
  %64 = vmatprep.subr.mxu0 0.0
  %65 = vmatpush1.msra.mxu0 0.0
  %66 = vmatprep.subr.mxu0 0.0
  %67 = vmatpush1.msra.mxu0 0.0
  %68 = vmatprep.subr.mxu0 0.0
  %69 = vmatpush1.msra.mxu0 0.0
  %70 = vmatprep.subr.mxu0 0.0
  %71 = vmatpush1.msra.mxu0 0.0
  %72 = vmatprep.subr.mxu0 0.0
  %73 = vmatpush1.msra.mxu0 0.0
  %74 = vmatprep.subr.mxu0 0.0
  %75 = vmatpush1.msra.mxu0 0.0
  %76 = vmatprep.subr.mxu0 0.0
  %77 = vmatpush1.msra.mxu0 0.0
  %78 = vmatprep.subr.mxu0 0.0
  %79 = vmatpush1.msra.mxu0 0.0
  %80 = vmatprep.subr.mxu0 0.0
  %81 = vmatpush1.msra.mxu0 0.0
  %82 = vmatprep.subr.mxu0 0.0
  %83 = vmatpush1.msra.mxu0 0.0
  %84 = vmatprep.subr.mxu0 0.0
  %85 = vmatpush1.msra.mxu0 0.0
  %86 = vmatprep.subr.mxu0 0.0
  %87 = vmatpush1.msra.mxu0 0.0
  %88 = vmatprep.subr.mxu0 0.0
  %89 = vmatpush1.msra.mxu0 0.0
  %90 = vmatprep.subr.mxu0 0.0
  %91 = vmatpush1.msra.mxu0 0.0
  %92 = vmatprep.subr.mxu0 0.0
  %93 = vmatpush1.msra.mxu0 0.0
  %94 = vmatprep.subr.mxu0 0.0
  %95 = vmatpush1.msra.mxu0 0.0
  %96 = vmatprep.mubr.f32.mxu0 0.0
  %97 = vmatmul.mubr.f32.gmra.mrb[0].mxu0 %v30
  %v98 = vpop.f32.mrb[0].mxu0
  %v99 = vadd.f32 %v26, %v98
  %v100 = vpop.f32.mrb[0].mxu0
  %101 = vdwg.mxu0
  %vm102 = vcmask 7168
  %103 = vst.msk [vmem:[%s3] sm:$0xff] %vm102, %v99
  // Predicated region
  $region14: #{tpu_custom_call.1} parent=0 // pred_check
    _
  $region15: #{tpu_custom_call.1} parent=0 // pred_check_branch
    %105 = sbr.rel (0) target = $region17
  $region16: #{tpu_custom_call.1} parent=0 // pred_region
    _
  $region17: #{tpu_custom_call.1} parent=0 // pred_fallthru
    _
  // Predicated region
  $region18: #{tpu_custom_call.1} parent=0 // pred_check
    _
  $region19: #{tpu_custom_call.1} parent=0 // pred_check_branch
    %107 = sbr.rel (0) target = $region21
  $region20: #{tpu_custom_call.1} parent=0 // pred_region
    _
  $region21: #{tpu_custom_call.1} parent=0 // pred_fallthru
    _

</llo_original>
